<compile_context>
chip_gen: v5e
topology: v5e:2x2
jax: 0.10.0
libtpu: 0.0.40
codegen_flags: <defaults>
</compile_context>

<pallas_src>
import jax
import jax.numpy as jnp
from jax import lax
from jax.experimental import pallas as pl
from jax.experimental.pallas import tpu as pltpu


def _trend_kernel(m_ref, c_ref, x_ref, o_ref):
    """o[i] = M @ x[i] + c for every batch row in the block.

    m_ref : (L, L)       pre-folded operator T^T W (x dtype)
    c_ref : (L, 1)       pre-folded bias     T^T b (f32)
    x_ref : (bb, L, Dt)  input block
    o_ref : (bb, L, Dt)  trend output block
    """
    m = m_ref[...]
    l_blk, d_blk = o_ref.shape[1], o_ref.shape[2]
    # Hoist the bias broadcast out of the per-row loop (JAX does not CSE it).
    cb = jnp.broadcast_to(c_ref[...], (l_blk, d_blk)).astype(jnp.float32)
    bb = x_ref.shape[0]

    def body(i, carry):
        xb = x_ref[i]                                               # (L, Dt)
        acc = jnp.dot(m, xb, preferred_element_type=jnp.float32)    # f32 MXU acc
        o_ref[i] = (acc + cb).astype(o_ref.dtype)
        return carry

    lax.fori_loop(0, bb, body, 0, unroll=min(bb, 4))


def trend_process(x, w, b):
    """Pallas equivalent of Trend_process.forward (trend_block = Linear(L, p)).

    x: (B, L, D), w: (p, L), b: (p,).  Returns trend_part of shape (B, L, D),
    dtype x.dtype.
    """
    B, L, D = x.shape
    p = w.shape[0]
    assert p <= 4, "thetas_dim is too big."
    assert w.shape == (p, L) and b.shape == (p,)

    # Polynomial basis T^T (L, p), then fold the whole forward into one
    # operator:  out[b] = T^T (W x[b] + bias) = (T^T W) x[b] + (T^T bias).
    t = jnp.arange(L, dtype=jnp.float32) / L
    tt = jnp.stack([t ** i for i in range(p)], axis=1)                    # (L, p)
    w32 = w.astype(jnp.float32)
    m = jnp.dot(tt, w32, precision="highest")                             # (L, L)
    c = jnp.dot(tt, b.astype(jnp.float32).reshape(p, 1),
                precision="highest")                                      # (L, 1)

    out_dtype = x.dtype
    m = m.astype(x.dtype)          # MXU-native dtype (bf16 path stays bf16)

    itemsize = jnp.dtype(x.dtype).itemsize
    out_itemsize = jnp.dtype(out_dtype).itemsize

    # Generation-aware block / VMEM budgets.
    try:
        vmem_cap = int(pltpu.get_tpu_info().vmem_capacity_bytes)
    except Exception:
        vmem_cap = 64 * 1024 * 1024
    if vmem_cap >= 128 * 1024 * 1024:          # v5e / v6e (128 MiB physical)
        target_block_bytes = 8 << 20
        vmem_limit = 64 << 20
    else:                                       # v7x (64 MiB per TensorCore)
        target_block_bytes = 5 << 20
        vmem_limit = 44 << 20

    # Optional D tiling: only lane-dense tiles (multiples of 128), never below.
    tile_d = D
    if D >= 256:
        for cand in (512, 384, 256, 128):
            if D % cand == 0:
                tile_d = cand
                break

    # Batch rows per block: target block bytes, clamped so double-buffered
    # in+out blocks plus the resident M/c tiles fit the VMEM limit.
    row_bytes = L * tile_d * itemsize
    bb = max(1, target_block_bytes // max(row_bytes, 1))
    m_bytes = 2 * (L * L * jnp.dtype(m.dtype).itemsize + L * 4)
    denom = 2 * L * tile_d * (itemsize + out_itemsize)
    bb = min(bb, max(1, int((0.9 * vmem_limit - m_bytes) // max(denom, 1))))
    bb = min(bb, B)
    if B >= 2:
        bb = min(bb, pl.cdiv(B, 2))   # keep >= 2 batch steps so megacore has work
    grid_b = pl.cdiv(B, bb)            # non-divisible B: Pallas clips the last block
    grid_d = D // tile_d

    if grid_d > 1:
        grid = (grid_b, grid_d)
        dim_sem = ("parallel", "parallel")
        m_spec = pl.BlockSpec((L, L), lambda i, j: (0, 0))
        c_spec = pl.BlockSpec((L, 1), lambda i, j: (0, 0))
        x_spec = pl.BlockSpec((bb, L, tile_d), lambda i, j: (i, 0, j))
        o_spec = pl.BlockSpec((bb, L, tile_d), lambda i, j: (i, 0, j))
    else:
        grid = (grid_b,)
        dim_sem = ("parallel",)
        m_spec = pl.BlockSpec((L, L), lambda i: (0, 0))
        c_spec = pl.BlockSpec((L, 1), lambda i: (0, 0))
        x_spec = pl.BlockSpec((bb, L, D), lambda i: (i, 0, 0))
        o_spec = pl.BlockSpec((bb, L, D), lambda i: (i, 0, 0))

    cost = pl.CostEstimate(
        flops=2 * B * L * L * D,
        transcendentals=0,
        bytes_accessed=B * L * D * (itemsize + out_itemsize)
        + L * L * jnp.dtype(m.dtype).itemsize + L * 4,
    )

    out = pl.pallas_call(
        _trend_kernel,
        out_shape=jax.ShapeDtypeStruct((B, L, D), out_dtype),
        grid_spec=pltpu.PrefetchScalarGridSpec(
            num_scalar_prefetch=0,
            grid=grid,
            in_specs=[m_spec, c_spec, x_spec],
            out_specs=o_spec,
        ),
        compiler_params=pltpu.CompilerParams(
            dimension_semantics=dim_sem,
            vmem_limit_bytes=vmem_limit),
        cost_estimate=cost,
    )(m, c, x)
    return out


if __name__ == "__main__":
    key = jax.random.PRNGKey(0)
    B, L, D, p = 2, 16, 32, 4
    k1, k2, k3 = jax.random.split(key, 3)

    x = jax.random.normal(k1, (B, L, D), dtype=jnp.float32)
    w = (jax.random.normal(k2, (p, L), dtype=jnp.float32) / jnp.sqrt(L)).astype(jnp.float32)
    b = 0.1 * jax.random.normal(k3, (p,), dtype=jnp.float32)

    y = jax.block_until_ready(trend_process(x, w, b))

    # Pure-JAX reference mirroring the PyTorch forward.
    t = jnp.arange(L, dtype=jnp.float32) / L
    T = jnp.stack([t ** i for i in range(p)], axis=0)                        # (p, L)
    theta = jnp.einsum("bld,pl->bdp", x, w, precision="highest") + b          # (B, D, p)
    ref = jnp.einsum("bdp,pl->bld", theta, T, precision="highest")            # (B, L, D)

    assert y.shape == ref.shape and y.dtype == ref.dtype
    assert float(jnp.max(jnp.abs(y - ref))) < 5e-4

    print("KERNEL_OK")
</pallas_src>

<mosaic_0001>
module attributes {stable_mosaic.version = 11 : i64} {
  func.func @_trend_kernel(%arg0: i32, %arg1: memref<16x16xf32, #tpu.memory_space<vmem>>, %arg2: memref<16x1xf32, #tpu.memory_space<vmem>>, %arg3: memref<1x16x32xf32, #tpu.memory_space<vmem>>, %arg4: memref<1x16x32xf32, #tpu.memory_space<vmem>>) attributes {dimension_semantics = [#tpu.dimension_semantics<parallel>], iteration_bounds = array<i64: 2>, scalar_prefetch = 0 : i64, scratch_operands = 0 : i64, tpu.core_type = #tpu.core_type<tc>, window_params = [{pipeline_mode = #tpu.pipeline_mode<synchronous>, transform_indices = @transform_0, window_bounds = array<i64: 16, 16>}, {pipeline_mode = #tpu.pipeline_mode<synchronous>, transform_indices = @transform_1, window_bounds = array<i64: 16, 1>}, {transform_indices = @transform_2, window_bounds = array<i64: 1, 16, 32>}, {transform_indices = @transform_3, window_bounds = array<i64: 1, 16, 32>}]} {
    %c0 = arith.constant 0 : index
    %c0_0 = arith.constant 0 : index
    %0 = vector.load %arg1[%c0, %c0_0] : memref<16x16xf32, #tpu.memory_space<vmem>>, vector<16x16xf32>
    %c0_1 = arith.constant 0 : index
    %c0_2 = arith.constant 0 : index
    %1 = vector.load %arg2[%c0_1, %c0_2] : memref<16x1xf32, #tpu.memory_space<vmem>>, vector<16x1xf32>
    %2 = vector.shape_cast %1 : vector<16x1xf32> to vector<16x1xf32>
    %3 = vector.broadcast %2 : vector<16x1xf32> to vector<16x32xf32>
    %c0_i32 = arith.constant 0 : i32
    %4 = arith.index_cast %c0_i32 : i32 to index
    %c0_3 = arith.constant 0 : index
    %c0_4 = arith.constant 0 : index
    %5 = vector.load %arg3[%4, %c0_3, %c0_4] : memref<1x16x32xf32, #tpu.memory_space<vmem>>, vector<1x16x32xf32>
    %6 = vector.shape_cast %5 : vector<1x16x32xf32> to vector<16x32xf32>
    %cst = arith.constant dense<0.000000e+00> : vector<16x32xf32>
    %7 = tpu.matmul %0, %6, %cst {dimension_numbers = #tpu.dot_dimension_numbers<[1], [0], [0], [1], [0, 0, 1, 1], [], []>} : vector<16x16xf32>, vector<16x32xf32>, vector<16x32xf32> -> vector<16x32xf32>
    %8 = arith.addf %7, %3 : vector<16x32xf32>
    %9 = arith.index_cast %c0_i32 : i32 to index
    %c0_5 = arith.constant 0 : index
    %c0_6 = arith.constant 0 : index
    %10 = vector.load %arg4[%9, %c0_5, %c0_6] : memref<1x16x32xf32, #tpu.memory_space<vmem>>, vector<1x16x32xf32>
    %11 = vector.shape_cast %10 : vector<1x16x32xf32> to vector<16x32xf32>
    %12 = vector.shape_cast %8 : vector<16x32xf32> to vector<1x16x32xf32>
    tpu.vector_store %arg4[%9, %c0_5, %c0_6], %12 {strides = array<i32>} : memref<1x16x32xf32, #tpu.memory_space<vmem>>, vector<1x16x32xf32>,
    %c1_i32 = arith.constant 1 : i32
    return
  }
  func.func @transform_0(%arg0: i32) -> (i32, i32) {
    %c0_i32 = arith.constant 0 : i32
    %c0_i32_0 = arith.constant 0 : i32
    %c0_i32_1 = arith.constant 0 : i32
    return %c0_i32, %c0_i32_0 : i32, i32
  }
  func.func @transform_1(%arg0: i32) -> (i32, i32) {
    %c0_i32 = arith.constant 0 : i32
    %c0_i32_0 = arith.constant 0 : i32
    %c0_i32_1 = arith.constant 0 : i32
    return %c0_i32, %c0_i32_0 : i32, i32
  }
  func.func @transform_2(%arg0: i32) -> (i32, i32, i32) {
    %c0_i32 = arith.constant 0 : i32
    %c0_i32_0 = arith.constant 0 : i32
    %c0_i32_1 = arith.constant 0 : i32
    return %arg0, %c0_i32, %c0_i32_0 : i32, i32, i32
  }
  func.func @transform_3(%arg0: i32) -> (i32, i32, i32) {
    %c0_i32 = arith.constant 0 : i32
    %c0_i32_0 = arith.constant 0 : i32
    %c0_i32_1 = arith.constant 0 : i32
    return %arg0, %c0_i32, %c0_i32_0 : i32, i32, i32
  }
}

</mosaic_0001>

<llo_original>
// kernel: tpu_custom_call.1
$region0: #{tpu_custom_call.1}
  #allocation0 [shape = 'u32[]', space=smem, size = 0x4, offset = 0x4, fixed_abs, tag = 'smem constant byte address 0x4 - core index']
  #allocation1 [shape = 'u32[72,128]{1,0:T(1,128)}', space=vmem, size = 0x9000, scoped, tag = 'internal scratch']
  %s0 = inlined_call_operand.vmem [shape: f32[16,16], index: 0, kind: input, shape index: {}]
  %s1 = inlined_call_operand.vmem [shape: f32[16,1], index: 1, kind: input, shape index: {}]
  %s2 = inlined_call_operand.hbm [shape: f32[2,16,32], index: 2, kind: input, shape index: {}]
  %s3 = inlined_call_operand.hbm [shape: f32[2,16,32], index: 3, kind: output, shape index: {}]
  %s4 = sld [smem:[#allocation0]]
  $region49: #{tpu_custom_call.1} parent=0
    _
  %s6 = ssub.s32 1, %s4
  %s7 = scalar_select 0, %s6, %s4
  $region1: #{tpu_custom_call.1} parent=0
    #allocation2 [shape = 'u8[16384]{0}', space=vmem, size = 0x4000, scoped, tag = 'input window, operand 2']
    #allocation3 [shape = 's32[2]{0}', space=sflag, size = 0x8, scoped, tag = 'scoped memory for tpu_custom_call.1']
    #allocation4 [shape = 's32[2]{0}', space=sflag, size = 0x8, scoped, tag = 'scoped memory for tpu_custom_call.1']
    #allocation5 [shape = 'u8[16384]{0}', space=vmem, size = 0x4000, scoped, tag = 'output window, operand 0']
    %8 = vsyncpa [#allocation3], 0
    %s9 = scalar_lea.sflag [#allocation3], 1
    %10 = vsyncpa %s9, 0
    %11 = vsyncpa [#allocation4], 0
    %s12 = scalar_lea.sflag [#allocation4], 1
    %13 = vsyncpa %s12, 0
    loop: start=0, step=1, limit=4
    $region2: #{tpu_custom_call.1} parent=1 // loop_pre_header
      _
    $region3: #{tpu_custom_call.1} parent=1 // loop_header
      %s15 = sphi 0, %s19
      %p16 = scmp.ge.s32.totalorder %s15, 4
      %s23 = sphi 0, %s23
      %s25 = sphi 0, %s23
      %s26 = sphi 0, %s25
      %s40 = sphi 0, %s26
      %s44 = sphi 0, %s44
      %s46 = sphi 0, %s44
      %s47 = sphi 0, %s46
      %s61 = sphi 0, %s47
      %s67 = sphi 0, %s69
      %s70 = sphi 0, %s67
      %s71 = sphi 0, %s70
      %s87 = sphi 0, %s71
      %s93 = sphi 0, %s95
      %s96 = sphi 0, %s93
      %s97 = sphi 0, %s96
      %s113 = sphi 0, %s97
    $region4: #{tpu_custom_call.1} parent=1 // loop_header_branch
      %18 = sbr.rel (%p16) target = $region8
    $region5: #{tpu_custom_call.1} parent=1 // loop_body
      %s20 = ssub.s32 %s15, 1
      %s21 = ssub.s32 %s15, 2
      %s22 = sadd.s32 %s15, 1
      %s24 = sadd.s32 %s23, 1
      %p27 = scmp.eq.s32.totalorder %s15, 1
      %p28 = scmp.ne.s32.totalorder %s23, %s25
      %p29 = scmp.eq.s32.totalorder %s15, 0
      %p30 = por %p28, %p29
      %p31 = scmp.ne.s32.totalorder %s23, %s25
      %p32 = scmp.eq.s32.totalorder %s20, 1
      %p33 = por %p31, %p32
      %p34 = scmp.ne.s32.totalorder %s25, %s26
      %p35 = scmp.eq.s32.totalorder %s20, 0
      %p36 = por %p34, %p35
      %p37 = scmp.ne.s32.totalorder %s25, %s26
      %p38 = scmp.eq.s32.totalorder %s21, 1
      %p39 = por %p37, %p38
      %p41 = scmp.ne.s32.totalorder %s26, %s40
      %p42 = scmp.eq.s32.totalorder %s21, 0
      %p43 = por %p41, %p42
      %s45 = sadd.s32 %s44, 1
      %p48 = scmp.eq.s32.totalorder %s15, 1
      %p49 = scmp.ne.s32.totalorder %s44, %s46
      %p50 = scmp.eq.s32.totalorder %s15, 0
      %p51 = por %p49, %p50
      %p52 = scmp.ne.s32.totalorder %s44, %s46
      %p53 = scmp.eq.s32.totalorder %s20, 1
      %p54 = por %p52, %p53
      %p55 = scmp.ne.s32.totalorder %s46, %s47
      %p56 = scmp.eq.s32.totalorder %s20, 0
      %p57 = por %p55, %p56
      %p58 = scmp.ne.s32.totalorder %s46, %s47
      %p59 = scmp.eq.s32.totalorder %s21, 1
      %p60 = por %p58, %p59
      %p62 = scmp.ne.s32.totalorder %s47, %s61
      %p63 = scmp.eq.s32.totalorder %s21, 0
      %p64 = por %p62, %p63
      %s65 = ssub.s32 %s15, %s22
      %p66 = scmp.eq.s32.totalorder %s65, 0
      %s68 = sadd.s32 %s67, 1
      %s69 = scalar_select %p66, %s67, %s68
      %p72 = pneg %p66
      %p73 = scmp.eq.s32.totalorder %s15, 1
      %p74 = por %p72, %p73
      %p75 = scmp.ne.s32.totalorder %s67, %s70
      %p76 = scmp.eq.s32.totalorder %s15, 0
      %p77 = por %p75, %p76
      %p78 = scmp.ne.s32.totalorder %s67, %s70
      %p79 = scmp.eq.s32.totalorder %s20, 1
      %p80 = por %p78, %p79
      %p81 = scmp.ne.s32.totalorder %s70, %s71
      %p82 = scmp.eq.s32.totalorder %s20, 0
      %p83 = por %p81, %p82
      %p84 = scmp.ne.s32.totalorder %s70, %s71
      %p85 = scmp.eq.s32.totalorder %s21, 1
      %p86 = por %p84, %p85
      %p88 = scmp.ne.s32.totalorder %s71, %s87
      %p89 = scmp.eq.s32.totalorder %s21, 0
      %p90 = por %p88, %p89
      %s91 = ssub.s32 %s15, %s22
      %p92 = scmp.eq.s32.totalorder %s91, 0
      %s94 = sadd.s32 %s93, 1
      %s95 = scalar_select %p92, %s93, %s94
      %p98 = pneg %p92
      %p99 = scmp.eq.s32.totalorder %s15, 1
      %p100 = por %p98, %p99
      %p101 = scmp.ne.s32.totalorder %s93, %s96
      %p102 = scmp.eq.s32.totalorder %s15, 0
      %p103 = por %p101, %p102
      %p104 = scmp.ne.s32.totalorder %s93, %s96
      %p105 = scmp.eq.s32.totalorder %s20, 1
      %p106 = por %p104, %p105
      %p107 = scmp.ne.s32.totalorder %s96, %s97
      %p108 = scmp.eq.s32.totalorder %s20, 0
      %p109 = por %p107, %p108
      %p110 = scmp.ne.s32.totalorder %s96, %s97
      %p111 = scmp.eq.s32.totalorder %s21, 1
      %p112 = por %p110, %p111
      %p114 = scmp.ne.s32.totalorder %s97, %s113
      %p115 = scmp.eq.s32.totalorder %s21, 0
      %p116 = por %p114, %p115
      %p117 = scmp.le.s32.totalorder 1, %s15
      %p118 = scmp.lt.s32.totalorder %s15, 3
      %p119 = pnand %p117, %p118
      %p120 = pneg %p119
      // Predicated region
      $region9: #{tpu_custom_call.1} parent=5 // pred_check
        _
      $region10: #{tpu_custom_call.1} parent=5 // pred_check_branch
        %122 = sbr.rel (%p119) target = $region12
      $region11: #{tpu_custom_call.1} parent=5 // pred_region
        %s123 = ssub.s32 %s15, 1
        // Predicated region
        $region13: #{tpu_custom_call.1} parent=11 // pred_check
          %p124 = pneg %p36
        $region14: #{tpu_custom_call.1} parent=11 // pred_check_branch
          %126 = sbr.rel (%p124) target = $region16
        $region15: #{tpu_custom_call.1} parent=11 // pred_region
          _
        $region16: #{tpu_custom_call.1} parent=11 // pred_fallthru
          _
        // Predicated region
        $region17: #{tpu_custom_call.1} parent=11 // pred_check
          %p127 = pneg %p57
        $region18: #{tpu_custom_call.1} parent=11 // pred_check_branch
          %129 = sbr.rel (%p127) target = $region20
        $region19: #{tpu_custom_call.1} parent=11 // pred_region
          _
        $region20: #{tpu_custom_call.1} parent=11 // pred_fallthru
          _
      $region12: #{tpu_custom_call.1} parent=5 // pred_fallthru
        _
      %p130 = scmp.lt.s32.totalorder %s15, 2
      // Predicated region
      $region21: #{tpu_custom_call.1} parent=5 // pred_check
        %p131 = pneg %p130
      $region22: #{tpu_custom_call.1} parent=5 // pred_check_branch
        %133 = sbr.rel (%p131) target = $region24
      $region23: #{tpu_custom_call.1} parent=5 // pred_region
        // Predicated region
        $region25: #{tpu_custom_call.1} parent=23 // pred_check
          %p134 = pneg %p77
        $region26: #{tpu_custom_call.1} parent=23 // pred_check_branch
          %136 = sbr.rel (%p134) target = $region28
        $region27: #{tpu_custom_call.1} parent=23 // pred_region
          %s137 = sand.u32 %s67, 1
          %s138 = scalar_lea.sflag [#allocation3], %s137
          %s139 = sand.u32 %s67, 1
          %s140 = smul.addr %s139, 16
          %s141 = scalar_lea.vmem [#allocation2], %s140
          %143 = vsyncadd %s138, 0
          %s144 = smul.addr %s15, 2
          %s145 = smul.addr %s144, 8
          %s146 = scalar_lea.hbm %s2, %s145
          %s147 = sshll.u32 %s146, 4
          %s148 = int_to_ptr.hbm [resolvable:$true] %s147
          %s149 = sshll.u32 %s141, 4
          %s150 = int_to_ptr.vmem [resolvable:$true] %s149
          %155 = dma.hbm_to_vmem [thread:$0]  %s148, 256, %s150, %s138, 128, 128, 8
        $region28: #{tpu_custom_call.1} parent=23 // pred_fallthru
          _
      $region24: #{tpu_custom_call.1} parent=5 // pred_fallthru
        _
      %p156 = scmp.le.s32.totalorder 1, %s15
      %p157 = scmp.lt.s32.totalorder %s15, 3
      %p158 = pnand %p156, %p157
      %p159 = pneg %p158
      // Predicated region
      $region29: #{tpu_custom_call.1} parent=5 // pred_check
        _
      $region30: #{tpu_custom_call.1} parent=5 // pred_check_branch
        %161 = sbr.rel (%p158) target = $region32
      $region31: #{tpu_custom_call.1} parent=5 // pred_region
        %s162 = ssub.s32 %s15, 1
        %s163 = sand.u32 %s70, 1
        %s164 = scalar_lea.sflag [#allocation3], %s163
        %s165 = sand.u32 %s70, 1
        %s166 = smul.addr %s165, 16
        %s167 = scalar_lea.vmem [#allocation2], %s166
        // Predicated region
        $region33: #{tpu_custom_call.1} parent=31 // pred_check
          %p168 = pneg %p83
        $region34: #{tpu_custom_call.1} parent=31 // pred_check_branch
          %170 = sbr.rel (%p168) target = $region36
        $region35: #{tpu_custom_call.1} parent=31 // pred_region
          %172 = dma.done %s164, 256
        $region36: #{tpu_custom_call.1} parent=31 // pred_fallthru
          _
        %p173 = pneg %p36
        %p174 = pneg %p33
        %p175 = pneg %p57
        %p176 = pneg %p54
        %s177 = sand.u32 %s70, 1
        %s178 = scalar_lea.sflag [#allocation3], %s177
        %s179 = sand.u32 %s70, 1
        %s180 = smul.addr %s179, 16
        %s181 = scalar_lea.vmem [#allocation2], %s180
        %p182 = pneg %p83
        %p183 = pneg %p80
        %p184 = pneg %p109
        %p185 = pneg %p106
        %s186 = sand.u32 %s96, 1
        %s187 = scalar_lea.sflag [#allocation4], %s186
        %s188 = sand.u32 %s96, 1
        %s189 = smul.addr %s188, 16
        %s190 = scalar_lea.vmem [#allocation5], %s189
        %v191 = vld [vmem:[%s0] sm:$0xff]
        %v192 = vld [vmem:[%s0 + $0x8] sm:$0xff]
        %v193 = vld [vmem:[%s1] sm:$0xff]
        %v194 = vld [vmem:[%s1 + $0x8] sm:$0xff]
        %196 = vset.pattern.permute.xlu0 0
        %197 = vperm.xlu0 %196, %v193
        %v198 = vpop.permute.xlu0 %197
        %201 = vset.pattern.permute.xlu0 0
        %202 = vperm.xlu0 %201, %v194
        %v203 = vpop.permute.xlu0 %202
        %v205 = vld [vmem:[%s167] sm:$0xff]
        %v206 = vld [vmem:[%s167 + $0x8] sm:$0xff]
        %vm207 = vcmask 130048
        %v209 = vsel %vm207, %v191, 0
        %v212 = vsel %vm207, %v192, 0
        %214 = vmatpush.msra.mxu0 0.0
        %215 = vmatpush.msra.mxu0 0.0
        %216 = vmatpush.msra.mxu0 0.0
        %217 = vmatpush.msra.mxu0 0.0
        %218 = vmatpush.msra.mxu0 0.0
        %219 = vmatpush.msra.mxu0 0.0
        %220 = vmatpush.msra.mxu0 0.0
        %221 = vmatpush.msra.mxu0 0.0
        %222 = vmatpush.msra.mxu0 0.0
        %223 = vmatpush.msra.mxu0 0.0
        %224 = vmatpush.msra.mxu0 0.0
        %225 = vmatpush.msra.mxu0 0.0
        %226 = vmatpush.msra.mxu0 0.0
        %227 = vmatpush.msra.mxu0 0.0
        %228 = vmatpush.msra.mxu0 %v206
        %229 = vmatpush.msra.mxu0 %v205
        %230 = vmatmul.f32.gmra.mxu0 %v209
        %v231 = vpop.f32.mrf.mxu0
        %v232 = vadd.f32 %v198, %v231
        %233 = vmatmul.f32.gmra.mxu0 %v212
        %v234 = vpop.f32.mrf.mxu0
        %v235 = vadd.f32 %v203, %v234
        %236 = vdwg.mxu0
        %vm237 = vcmask 261120
        %238 = vst.msk [vmem:[%s190] sm:$0xff] %vm237, %v232
        %239 = vst.msk [vmem:[%s190 + $0x8] sm:$0xff] %vm237, %v235
        %s240 = sand.u32 %s96, 1
        %s241 = scalar_lea.sflag [#allocation4], %s240
        %s242 = sand.u32 %s96, 1
        %s243 = smul.addr %s242, 16
        %s244 = scalar_lea.vmem [#allocation5], %s243
        // Predicated region
        $region37: #{tpu_custom_call.1} parent=31 // pred_check
          %p245 = pneg %p106
        $region38: #{tpu_custom_call.1} parent=31 // pred_check_branch
          %247 = sbr.rel (%p245) target = $region40
        $region39: #{tpu_custom_call.1} parent=31 // pred_region
          %249 = vsyncadd %s241, 0
          %s250 = smul.addr %s20, 2
          %s251 = smul.addr %s250, 8
          %s252 = scalar_lea.hbm %s3, %s251
          %s253 = sshll.u32 %s244, 4
          %s254 = int_to_ptr.vmem [resolvable:$true] %s253
          %s255 = sshll.u32 %s252, 4
          %s256 = int_to_ptr.hbm [resolvable:$true] %s255
          %261 = dma.vmem_to_hbm [thread:$0]  %s254, 256, %s256, %s241, 128, 128, 8
        $region40: #{tpu_custom_call.1} parent=31 // pred_fallthru
          _
      $region32: #{tpu_custom_call.1} parent=5 // pred_fallthru
        _
      %p262 = scmp.le.s32.totalorder 2, %s15
      // Predicated region
      $region41: #{tpu_custom_call.1} parent=5 // pred_check
        %p263 = pneg %p262
      $region42: #{tpu_custom_call.1} parent=5 // pred_check_branch
        %265 = sbr.rel (%p263) target = $region44
      $region43: #{tpu_custom_call.1} parent=5 // pred_region
        %s266 = ssub.s32 %s15, 2
        // Predicated region
        $region45: #{tpu_custom_call.1} parent=43 // pred_check
          %p267 = pneg %p112
        $region46: #{tpu_custom_call.1} parent=43 // pred_check_branch
          %269 = sbr.rel (%p267) target = $region48
        $region47: #{tpu_custom_call.1} parent=43 // pred_region
          %s270 = sand.u32 %s97, 1
          %s271 = scalar_lea.sflag [#allocation4], %s270
          %s272 = sand.u32 %s97, 1
          %s273 = smul.addr %s272, 16
          %s274 = scalar_lea.vmem [#allocation5], %s273
          %276 = dma.done %s271, 256
        $region48: #{tpu_custom_call.1} parent=43 // pred_fallthru
          _
      $region44: #{tpu_custom_call.1} parent=5 // pred_fallthru
        _
    $region6: #{tpu_custom_call.1} parent=1 // loop_footer
      %s19 = sadd.s32 1, %s15
    $region7: #{tpu_custom_call.1} parent=1 // loop_footer_branch
      %14 = sbr.rel target = $region3
    $region8: #{tpu_custom_call.1} parent=1 // loop_exit
      _
    %277 = vsyncpa [#allocation3], 1
    %s278 = scalar_lea.sflag [#allocation3], 1
    %279 = vsyncpa %s278, 1
    %280 = vsyncpa [#allocation4], 1
    %s281 = scalar_lea.sflag [#allocation4], 1
    %282 = vsyncpa %s281, 1

</llo_original>
